<compile_context>
chip_gen: v5e
topology: v5e:2x2
jax: 0.10.0
libtpu: 0.0.40
codegen_flags: <defaults>
</compile_context>

<pallas_src>
import functools

import jax
import jax.numpy as jnp
from jax.experimental import pallas as pl
from jax.experimental.pallas import tpu as pltpu

LANES = 128
SUBLANES = 8


def _cdiv(a, b):
    return -(-a // b)


def _round_up(x, m):
    return ((x + m - 1) // m) * m


def _round_down(x, m):
    return (x // m) * m


def _tpu_vmem_capacity_bytes():
    """Best-effort physical VMEM query; None if unavailable."""
    try:
        info = pltpu.get_tpu_info()
    except Exception:
        return None
    for name in ("vmem_capacity_bytes", "vmem_bytes", "vmem_size_bytes"):
        val = getattr(info, name, None)
        if isinstance(val, int) and val > 0:
            return val
    return None


def _dice_loss_jax(logits, targets, eps):
    """Plain-JAX path (tiny inputs / reference)."""
    probs = jax.nn.sigmoid(logits.astype(jnp.float32))
    t = targets.astype(jnp.float32)
    inter = jnp.sum(t * probs)
    union = jnp.sum(t) + jnp.sum(probs)
    dice = 2.0 * inter / (union + jnp.float32(eps))
    return (jnp.float32(1.0) - dice).astype(jnp.float32)


def _dice_partials_kernel(logits_ref, targets_ref, out_ref, acc_ref, *,
                          block_rows, chunk_rows, rows_valid, mask_possible):
    """Grid = (parallel slice c, row-block i within the slice).

    Accumulates, into a (3, 8, 128) f32 VMEM scratch:
        acc[0] = sum(t * tanh(0.5*x)),  acc[1] = sum(t),  acc[2] = sum(tanh(0.5*x))
    over the valid rows of this slice.  The sigmoid affine (p = 0.5*th + 0.5)
    and the dice formula are applied to three scalars in the wrapper.
    """
    c = pl.program_id(0)
    i = pl.program_id(1)
    steps = pl.num_programs(1)

    @pl.when(i == 0)
    def _init():
        acc_ref[...] = jnp.zeros_like(acc_ref)

    # Logical (unclamped) first row of this block within the flattened input.
    row_base = (c * steps + i) * block_rows

    num_chunks = block_rows // chunk_rows
    sub_tiles = chunk_rows // SUBLANES

    def run_chunks(masked):
        def chunk_body(j, carry):
            start = j * chunk_rows
            if not isinstance(start, int):
                start = pl.multiple_of(start, chunk_rows)
            x = logits_ref[pl.ds(start, chunk_rows), :].astype(jnp.float32)
            t = targets_ref[pl.ds(start, chunk_rows), :].astype(jnp.float32)
            # sigmoid(x) = 0.5 * tanh(0.5 x) + 0.5 -> one EUP op + one VPU mul;
            # the affine is recombined algebraically in the wrapper.
            th = jnp.tanh(0.5 * x)
            if masked:
                # Mask rows at/after rows_valid (partial trailing block or a
                # fully-out-of-range duplicate block).  Garbage (possibly NaN)
                # data in the unmasked lanes is discarded by the select.
                row = jax.lax.broadcasted_iota(jnp.int32, (chunk_rows, LANES), 0)
                ok = (row_base + start + row) < rows_valid
                zero = jnp.float32(0.0)
                th = jnp.where(ok, th, zero)
                t = jnp.where(ok, t, zero)
            tth = t * th
            # Reduce over the leading (non-tiled) axis: vreg-wise VPU adds.
            acc_ref[0] += jnp.sum(tth.reshape(sub_tiles, SUBLANES, LANES), axis=0)
            acc_ref[1] += jnp.sum(t.reshape(sub_tiles, SUBLANES, LANES), axis=0)
            acc_ref[2] += jnp.sum(th.reshape(sub_tiles, SUBLANES, LANES), axis=0)
            return carry

        if num_chunks == 1:
            chunk_body(0, 0)
        else:
            jax.lax.fori_loop(0, num_chunks, chunk_body, 0, unroll=2)

    if mask_possible:
        needs_mask = row_base + block_rows > rows_valid

        @pl.when(jnp.logical_not(needs_mask))
        def _full_block():
            run_chunks(False)

        @pl.when(needs_mask)
        def _partial_block():
            run_chunks(True)
    else:
        run_chunks(False)

    @pl.when(i == steps - 1)
    def _finalize():
        out_ref[0] = acc_ref[...]


def dice_loss(logits, targets, *, eps=1e-7, block_rows=None, chunk_rows=256,
              num_parallel=2):
    """DiceLoss forward (sigmoid activation, no threshold): scalar f32 loss."""
    if logits.shape != targets.shape:
        raise ValueError("logits and targets must have the same shape")

    n_elem = int(logits.size)
    flat_l = jnp.ravel(logits)
    flat_t = jnp.ravel(targets)

    rows = n_elem // LANES                 # full 128-lane rows
    rem = n_elem - rows * LANES            # <128-element ragged tail

    itemsize_l = jnp.dtype(logits.dtype).itemsize
    itemsize_t = jnp.dtype(targets.dtype).itemsize
    # Sublane alignment: 8 rows for 32-bit, 16 for 16-bit, 32 for 8-bit inputs.
    align = SUBLANES * max(1, 4 // max(min(itemsize_l, itemsize_t), 1))

    if rows < align:
        # Tiny input: a few vregs of work; plain JAX is optimal.
        return _dice_loss_jax(flat_l, flat_t, eps)

    # ---------------- choose tiling (all static Python) ----------------------
    if block_rows is None:
        cap = _tpu_vmem_capacity_bytes()
        # v7x-class chips: 64 MiB VMEM/TC but ~3.2 TB/s HBM -> bigger blocks to
        # amortize the ~0.35 us/grid-step overhead.  v5e/v6e: 4 MiB f32 blocks.
        block_rows = 16384 if (cap is not None and cap <= (80 << 20)) else 8192

    itembytes = itemsize_l + itemsize_t
    input_budget = 40 << 20                # double-buffered input-block bytes
    br = min(int(block_rows),
             max(align, _round_down(input_budget // (2 * LANES * itembytes), align)))
    br = max(align, _round_down(br, align))

    P = max(1, int(num_parallel))
    if rows < P * align:
        P = 1
    rps = _cdiv(rows, P)                   # rows per parallel slice

    br = min(br, _round_up(rps, align))    # don't over-allocate for small inputs
    br = min(br, _round_down(rows, align))  # keep the block within the array
    br = max(align, br)

    chunk = max(align, _round_down(min(int(chunk_rows), br), align))
    br = max(chunk, _round_down(br, chunk))  # block = whole number of chunks

    steps = _cdiv(rps, br)                 # inner (reduction) grid extent
    nb = _cdiv(rows, br)                   # number of distinct row-blocks
    mask_possible = (P * steps * br != rows)

    if P * steps == nb:
        def in_index(c, i):
            return (c * steps + i, 0)
    else:
        last_block = nb - 1                # clamp the (<=1) duplicate block

        def in_index(c, i):
            return (jnp.minimum(c * steps + i, last_block), 0)

    n_bulk = rows * LANES
    bulk_l = flat_l if rem == 0 else flat_l[:n_bulk]
    bulk_t = flat_t if rem == 0 else flat_t[:n_bulk]
    l2d = bulk_l.reshape(rows, LANES)
    t2d = bulk_t.reshape(rows, LANES)

    kernel = functools.partial(
        _dice_partials_kernel,
        block_rows=br, chunk_rows=chunk, rows_valid=rows,
        mask_possible=mask_possible)

    in_buf_bytes = 2 * br * LANES * itembytes      # double-buffered inputs
    vmem_limit = int(min(max(in_buf_bytes + (8 << 20), 32 << 20), 48 << 20))

    partials = pl.pallas_call(
        kernel,
        out_shape=jax.ShapeDtypeStruct((P, 3, SUBLANES, LANES), jnp.float32),
        grid_spec=pltpu.PrefetchScalarGridSpec(
            num_scalar_prefetch=0,
            grid=(P, steps),
            in_specs=[
                pl.BlockSpec((br, LANES), in_index),
                pl.BlockSpec((br, LANES), in_index),
            ],
            out_specs=pl.BlockSpec((1, 3, SUBLANES, LANES),
                                   lambda c, i: (c, 0, 0, 0)),
            scratch_shapes=[pltpu.VMEM((3, SUBLANES, LANES), jnp.float32)],
        ),
        compiler_params=pltpu.CompilerParams(
            dimension_semantics=("parallel", "arbitrary"),
            vmem_limit_bytes=vmem_limit,
        ),
    )(l2d, t2d)

    # Tiny final combine in plain JAX.
    sums = jnp.sum(partials, axis=(0, 2, 3))       # (3,): [sum(t*th), sum(t), sum(th)]
    s_tth, s_t, s_th = sums[0], sums[1], sums[2]

    # Undo the tanh hoist over the n_bulk valid bulk elements:
    #   p = 0.5*th + 0.5  =>  sum(p) = 0.5*sum(th) + 0.5*n_bulk
    #                         sum(t*p) = 0.5*(sum(t*th) + sum(t))
    intersection = 0.5 * (s_tth + s_t)
    sum_t = s_t
    sum_p = 0.5 * s_th + 0.5 * jnp.float32(n_bulk)

    if rem:
        # Ragged tail (<128 elements): negligible plain-JAX work.
        x_tail = flat_l[n_bulk:].astype(jnp.float32)
        t_tail = flat_t[n_bulk:].astype(jnp.float32)
        p_tail = jax.nn.sigmoid(x_tail)
        intersection = intersection + jnp.sum(t_tail * p_tail)
        sum_t = sum_t + jnp.sum(t_tail)
        sum_p = sum_p + jnp.sum(p_tail)

    union = sum_t + sum_p
    dice = 2.0 * intersection / (union + jnp.float32(eps))
    return (jnp.float32(1.0) - dice).astype(jnp.float32)


def _dice_loss_ref(logits, targets, eps=1e-7):
    return _dice_loss_jax(logits, targets, eps)


if __name__ == "__main__":
    cases = [
        # shape, logits dtype, targets dtype, extra kwargs
        ((2, 4, 16, 16), jnp.float32, jnp.float32, {}),            # exact 128-lane coverage
        ((2, 3, 15, 16), jnp.float32, jnp.float32, {}),            # partial block + <128 tail
        ((2, 4, 32, 48), jnp.bfloat16, jnp.int8, {}),              # narrow dtypes stream directly
        ((3, 4, 16, 16), jnp.float32, jnp.float32,
         dict(block_rows=8, chunk_rows=8)),                        # duplicate-block clamp path
    ]
    keys = jax.random.split(jax.random.PRNGKey(0), len(cases))
    for (shape, ldt, tdt, kw), k in zip(cases, keys):
        k1, k2 = jax.random.split(k)
        logits = jax.random.normal(k1, shape, dtype=jnp.float32).astype(ldt)
        targets = (jax.random.uniform(k2, shape) > 0.5).astype(tdt)

        loss = jax.block_until_ready(dice_loss(logits, targets, **kw))
        ref = jax.block_until_ready(_dice_loss_ref(logits, targets))
        assert jnp.allclose(loss, ref, atol=1e-5, rtol=1e-5), (
            shape, float(loss), float(ref))

    print("KERNEL_OK")
</pallas_src>

<mosaic_0001>
module attributes {stable_mosaic.version = 11 : i64} {
  func.func @_dice_partials_kernel(%arg0: i32, %arg1: i32, %arg2: memref<8x128xf32, #tpu.memory_space<vmem>>, %arg3: memref<8x128xf32, #tpu.memory_space<vmem>>, %arg4: memref<1x3x8x128xf32, #tpu.memory_space<vmem>>, %arg5: memref<3x8x128xf32, #tpu.memory_space<vmem>>) attributes {dimension_semantics = [#tpu.dimension_semantics<parallel>, #tpu.dimension_semantics<arbitrary>], iteration_bounds = array<i64: 2, 1>, scalar_prefetch = 0 : i64, scratch_operands = 1 : i64, tpu.core_type = #tpu.core_type<tc>, window_params = [{transform_indices = @transform_0, window_bounds = array<i64: 8, 128>}, {transform_indices = @transform_1, window_bounds = array<i64: 8, 128>}, {transform_indices = @transform_2, window_bounds = array<i64: 1, 3, 8, 128>}]} {
    %c0_i32 = arith.constant 0 : i32
    %0 = arith.cmpi eq, %arg1, %c0_i32 : i32
    %1 = arith.extui %0 : i1 to i32
    %c0_i32_0 = arith.constant 0 : i32
    %2 = arith.cmpi ne, %1, %c0_i32_0 : i32
    scf.if %2 {
      %cst_25 = arith.constant 0.000000e+00 : f32
      %36 = vector.broadcast %cst_25 : f32 to vector<3x8x128xf32>
      %c0_26 = arith.constant 0 : index
      %c0_27 = arith.constant 0 : index
      %c0_28 = arith.constant 0 : index
      %37 = vector.load %arg5[%c0_26, %c0_27, %c0_28] : memref<3x8x128xf32, #tpu.memory_space<vmem>>, vector<3x8x128xf32>
      tpu.vector_store %arg5[%c0_26, %c0_27, %c0_28], %36 {strides = array<i32>} : memref<3x8x128xf32, #tpu.memory_space<vmem>>, vector<3x8x128xf32>,
    } else {
    }
    %c0 = arith.constant 0 : index
    %c0_1 = arith.constant 0 : index
    %3 = vector.load %arg2[%c0, %c0_1] : memref<8x128xf32, #tpu.memory_space<vmem>>, vector<8x128xf32>
    %c0_2 = arith.constant 0 : index
    %c0_3 = arith.constant 0 : index
    %4 = vector.load %arg3[%c0_2, %c0_3] : memref<8x128xf32, #tpu.memory_space<vmem>>, vector<8x128xf32>
    %cst = arith.constant 5.000000e-01 : f32
    %5 = vector.broadcast %cst : f32 to vector<8x128xf32>
    %6 = arith.mulf %5, %3 : vector<8x128xf32>
    %7 = math.tanh %6 : vector<8x128xf32>
    %8 = arith.mulf %4, %7 : vector<8x128xf32>
    %c0_4 = arith.constant 0 : index
    %c0_5 = arith.constant 0 : index
    %c0_6 = arith.constant 0 : index
    %9 = vector.load %arg5[%c0_4, %c0_5, %c0_6] : memref<3x8x128xf32, #tpu.memory_space<vmem>>, vector<1x8x128xf32>
    %10 = vector.shape_cast %9 : vector<1x8x128xf32> to vector<8x128xf32>
    %11 = vector.shape_cast %8 : vector<8x128xf32> to vector<1x8x128xf32>
    %cst_7 = arith.constant dense<0.000000e+00> : vector<8x128xf32>
    %12 = vector.multi_reduction <add>, %11, %cst_7 [0] : vector<1x8x128xf32> to vector<8x128xf32>
    %13 = arith.addf %10, %12 : vector<8x128xf32>
    %c0_8 = arith.constant 0 : index
    %c0_9 = arith.constant 0 : index
    %c0_10 = arith.constant 0 : index
    %14 = vector.load %arg5[%c0_8, %c0_9, %c0_10] : memref<3x8x128xf32, #tpu.memory_space<vmem>>, vector<1x8x128xf32>
    %15 = vector.shape_cast %14 : vector<1x8x128xf32> to vector<8x128xf32>
    %16 = vector.shape_cast %13 : vector<8x128xf32> to vector<1x8x128xf32>
    tpu.vector_store %arg5[%c0_8, %c0_9, %c0_10], %16 {strides = array<i32>} : memref<3x8x128xf32, #tpu.memory_space<vmem>>, vector<1x8x128xf32>,
    %c1 = arith.constant 1 : index
    %c0_11 = arith.constant 0 : index
    %c0_12 = arith.constant 0 : index
    %17 = vector.load %arg5[%c1, %c0_11, %c0_12] : memref<3x8x128xf32, #tpu.memory_space<vmem>>, vector<1x8x128xf32>
    %18 = vector.shape_cast %17 : vector<1x8x128xf32> to vector<8x128xf32>
    %19 = vector.shape_cast %4 : vector<8x128xf32> to vector<1x8x128xf32>
    %cst_13 = arith.constant dense<0.000000e+00> : vector<8x128xf32>
    %20 = vector.multi_reduction <add>, %19, %cst_13 [0] : vector<1x8x128xf32> to vector<8x128xf32>
    %21 = arith.addf %18, %20 : vector<8x128xf32>
    %c1_14 = arith.constant 1 : index
    %c0_15 = arith.constant 0 : index
    %c0_16 = arith.constant 0 : index
    %22 = vector.load %arg5[%c1_14, %c0_15, %c0_16] : memref<3x8x128xf32, #tpu.memory_space<vmem>>, vector<1x8x128xf32>
    %23 = vector.shape_cast %22 : vector<1x8x128xf32> to vector<8x128xf32>
    %24 = vector.shape_cast %21 : vector<8x128xf32> to vector<1x8x128xf32>
    tpu.vector_store %arg5[%c1_14, %c0_15, %c0_16], %24 {strides = array<i32>} : memref<3x8x128xf32, #tpu.memory_space<vmem>>, vector<1x8x128xf32>,
    %c2 = arith.constant 2 : index
    %c0_17 = arith.constant 0 : index
    %c0_18 = arith.constant 0 : index
    %25 = vector.load %arg5[%c2, %c0_17, %c0_18] : memref<3x8x128xf32, #tpu.memory_space<vmem>>, vector<1x8x128xf32>
    %26 = vector.shape_cast %25 : vector<1x8x128xf32> to vector<8x128xf32>
    %27 = vector.shape_cast %7 : vector<8x128xf32> to vector<1x8x128xf32>
    %cst_19 = arith.constant dense<0.000000e+00> : vector<8x128xf32>
    %28 = vector.multi_reduction <add>, %27, %cst_19 [0] : vector<1x8x128xf32> to vector<8x128xf32>
    %29 = arith.addf %26, %28 : vector<8x128xf32>
    %c2_20 = arith.constant 2 : index
    %c0_21 = arith.constant 0 : index
    %c0_22 = arith.constant 0 : index
    %30 = vector.load %arg5[%c2_20, %c0_21, %c0_22] : memref<3x8x128xf32, #tpu.memory_space<vmem>>, vector<1x8x128xf32>
    %31 = vector.shape_cast %30 : vector<1x8x128xf32> to vector<8x128xf32>
    %32 = vector.shape_cast %29 : vector<8x128xf32> to vector<1x8x128xf32>
    tpu.vector_store %arg5[%c2_20, %c0_21, %c0_22], %32 {strides = array<i32>} : memref<3x8x128xf32, #tpu.memory_space<vmem>>, vector<1x8x128xf32>,
    %c0_i32_23 = arith.constant 0 : i32
    %33 = arith.cmpi eq, %arg1, %c0_i32_23 : i32
    %34 = arith.extui %33 : i1 to i32
    %c0_i32_24 = arith.constant 0 : i32
    %35 = arith.cmpi ne, %34, %c0_i32_24 : i32
    scf.if %35 {
      %c0_25 = arith.constant 0 : index
      %c0_26 = arith.constant 0 : index
      %c0_27 = arith.constant 0 : index
      %36 = vector.load %arg5[%c0_25, %c0_26, %c0_27] : memref<3x8x128xf32, #tpu.memory_space<vmem>>, vector<3x8x128xf32>
      %c0_28 = arith.constant 0 : index
      %c0_29 = arith.constant 0 : index
      %c0_30 = arith.constant 0 : index
      %c0_31 = arith.constant 0 : index
      %37 = vector.load %arg4[%c0_28, %c0_29, %c0_30, %c0_31] : memref<1x3x8x128xf32, #tpu.memory_space<vmem>>, vector<1x3x8x128xf32>
      %38 = vector.shape_cast %37 : vector<1x3x8x128xf32> to vector<3x8x128xf32>
      %39 = vector.shape_cast %36 : vector<3x8x128xf32> to vector<1x3x8x128xf32>
      tpu.vector_store %arg4[%c0_28, %c0_29, %c0_30, %c0_31], %39 {strides = array<i32>} : memref<1x3x8x128xf32, #tpu.memory_space<vmem>>, vector<1x3x8x128xf32>,
    } else {
    }
    return
  }
  func.func @transform_0(%arg0: i32, %arg1: i32) -> (i32, i32) {
    %c1_i32 = arith.constant 1 : i32
    %0 = arith.muli %arg0, %c1_i32 : i32
    %1 = arith.addi %0, %arg1 : i32
    %c0_i32 = arith.constant 0 : i32
    %c0_i32_0 = arith.constant 0 : i32
    return %1, %c0_i32 : i32, i32
  }
  func.func @transform_1(%arg0: i32, %arg1: i32) -> (i32, i32) {
    %c1_i32 = arith.constant 1 : i32
    %0 = arith.muli %arg0, %c1_i32 : i32
    %1 = arith.addi %0, %arg1 : i32
    %c0_i32 = arith.constant 0 : i32
    %c0_i32_0 = arith.constant 0 : i32
    return %1, %c0_i32 : i32, i32
  }
  func.func @transform_2(%arg0: i32, %arg1: i32) -> (i32, i32, i32, i32) {
    %c0_i32 = arith.constant 0 : i32
    %c0_i32_0 = arith.constant 0 : i32
    %c0_i32_1 = arith.constant 0 : i32
    %c0_i32_2 = arith.constant 0 : i32
    return %arg0, %c0_i32, %c0_i32_0, %c0_i32_1 : i32, i32, i32, i32
  }
}

</mosaic_0001>

<llo_original>
// kernel: tpu_custom_call.1
$region0: #{tpu_custom_call.1}
  #allocation0 [shape = 'u32[]', space=smem, size = 0x4, offset = 0x4, fixed_abs, tag = 'smem constant byte address 0x4 - core index']
  #allocation1 [shape = 'u32[72,128]{1,0:T(1,128)}', space=vmem, size = 0x9000, scoped, tag = 'internal scratch']
  #allocation2 [shape = 'f32[3,8,128]{2,1,0:T(8,128)}', space=vmem, size = 0x3000, scoped, tag = 'scratch operand']
  %s0 = inlined_call_operand.hbm [shape: f32[16,128], index: 0, kind: input, shape index: {}]
  %s1 = inlined_call_operand.hbm [shape: f32[16,128], index: 1, kind: input, shape index: {}]
  %s2 = inlined_call_operand.hbm [shape: f32[2,3,8,128], index: 2, kind: output, shape index: {}]
  %s3 = sld [smem:[#allocation0]]
  $region57: #{tpu_custom_call.1} parent=0
    _
  %s5 = ssub.s32 1, %s3
  %s6 = scalar_select 0, %s5, %s3
  $region1: #{tpu_custom_call.1} parent=0
    #allocation3 [shape = 'u8[8192]{0}', space=vmem, size = 0x2000, scoped, tag = 'input window, operand 0']
    #allocation4 [shape = 's32[2]{0}', space=sflag, size = 0x8, scoped, tag = 'scoped memory for tpu_custom_call.1']
    #allocation5 [shape = 's32[2]{0}', space=sflag, size = 0x8, scoped, tag = 'scoped memory for tpu_custom_call.1']
    #allocation6 [shape = 'u8[8192]{0}', space=vmem, size = 0x2000, scoped, tag = 'input window, operand 1']
    #allocation7 [shape = 's32[2]{0}', space=sflag, size = 0x8, scoped, tag = 'scoped memory for tpu_custom_call.1']
    #allocation8 [shape = 'u8[24576]{0}', space=vmem, size = 0x6000, scoped, tag = 'output window, operand 0']
    %7 = vsyncpa [#allocation4], 0
    %s8 = scalar_lea.sflag [#allocation4], 1
    %9 = vsyncpa %s8, 0
    %10 = vsyncpa [#allocation7], 0
    %s11 = scalar_lea.sflag [#allocation7], 1
    %12 = vsyncpa %s11, 0
    %13 = vsyncpa [#allocation5], 0
    %s14 = scalar_lea.sflag [#allocation5], 1
    %15 = vsyncpa %s14, 0
    loop: start=0, step=1, limit=4
    $region2: #{tpu_custom_call.1} parent=1 // loop_pre_header
      _
    $region3: #{tpu_custom_call.1} parent=1 // loop_header
      %s17 = sphi 0, %s21
      %p18 = scmp.ge.s32.totalorder %s17, 4
      %s24 = sphi 0, %s36
      %s25 = sphi 0, %s32
      %s26 = sphi 0, %s24
      %s27 = sphi 0, %s25
      %s28 = sphi 0, %s26
      %s29 = sphi 0, %s27
      %s41 = sphi 0, %s43
      %s44 = sphi 0, %s41
      %s45 = sphi 0, %s44
      %s61 = sphi 0, %s45
      %s69 = sphi 0, %s71
      %s72 = sphi 0, %s69
      %s73 = sphi 0, %s72
      %s89 = sphi 0, %s73
      %s95 = sphi 0, %s97
      %s98 = sphi 0, %s95
      %s99 = sphi 0, %s98
      %s115 = sphi 0, %s99
    $region4: #{tpu_custom_call.1} parent=1 // loop_header_branch
      %20 = sbr.rel (%p18) target = $region8
    $region5: #{tpu_custom_call.1} parent=1 // loop_body
      %s22 = ssub.s32 %s17, 1
      %s23 = ssub.s32 %s17, 2
      %s30 = sadd.s32 1, %s25
      %p31 = scmp.ge.s32.totalorder %s30, 1
      %s32 = scalar_select %p31, 0, %s30
      %s33 = sadd.s32 1, %s24
      %s34 = scalar_select %p31, %s33, %s24
      %p35 = scmp.ge.s32.totalorder %s34, 2
      %s36 = scalar_select %p35, 0, %s34
      %s37 = sadd.s32 %s24, %s25
      %s38 = sadd.s32 %s36, %s32
      %s39 = ssub.s32 %s37, %s38
      %p40 = scmp.eq.s32.totalorder %s39, 0
      %s42 = sadd.s32 %s41, 1
      %s43 = scalar_select %p40, %s41, %s42
      %p46 = pneg %p40
      %p47 = scmp.eq.s32.totalorder %s17, 1
      %p48 = por %p46, %p47
      %p49 = scmp.ne.s32.totalorder %s41, %s44
      %p50 = scmp.eq.s32.totalorder %s17, 0
      %p51 = por %p49, %p50
      %p52 = scmp.ne.s32.totalorder %s41, %s44
      %p53 = scmp.eq.s32.totalorder %s22, 1
      %p54 = por %p52, %p53
      %p55 = scmp.ne.s32.totalorder %s44, %s45
      %p56 = scmp.eq.s32.totalorder %s22, 0
      %p57 = por %p55, %p56
      %p58 = scmp.ne.s32.totalorder %s44, %s45
      %p59 = scmp.eq.s32.totalorder %s23, 1
      %p60 = por %p58, %p59
      %p62 = scmp.ne.s32.totalorder %s45, %s61
      %p63 = scmp.eq.s32.totalorder %s23, 0
      %p64 = por %p62, %p63
      %s65 = sadd.s32 %s24, %s25
      %s66 = sadd.s32 %s36, %s32
      %s67 = ssub.s32 %s65, %s66
      %p68 = scmp.eq.s32.totalorder %s67, 0
      %s70 = sadd.s32 %s69, 1
      %s71 = scalar_select %p68, %s69, %s70
      %p74 = pneg %p68
      %p75 = scmp.eq.s32.totalorder %s17, 1
      %p76 = por %p74, %p75
      %p77 = scmp.ne.s32.totalorder %s69, %s72
      %p78 = scmp.eq.s32.totalorder %s17, 0
      %p79 = por %p77, %p78
      %p80 = scmp.ne.s32.totalorder %s69, %s72
      %p81 = scmp.eq.s32.totalorder %s22, 1
      %p82 = por %p80, %p81
      %p83 = scmp.ne.s32.totalorder %s72, %s73
      %p84 = scmp.eq.s32.totalorder %s22, 0
      %p85 = por %p83, %p84
      %p86 = scmp.ne.s32.totalorder %s72, %s73
      %p87 = scmp.eq.s32.totalorder %s23, 1
      %p88 = por %p86, %p87
      %p90 = scmp.ne.s32.totalorder %s73, %s89
      %p91 = scmp.eq.s32.totalorder %s23, 0
      %p92 = por %p90, %p91
      %s93 = ssub.s32 %s24, %s36
      %p94 = scmp.eq.s32.totalorder %s93, 0
      %s96 = sadd.s32 %s95, 1
      %s97 = scalar_select %p94, %s95, %s96
      %p100 = pneg %p94
      %p101 = scmp.eq.s32.totalorder %s17, 1
      %p102 = por %p100, %p101
      %p103 = scmp.ne.s32.totalorder %s95, %s98
      %p104 = scmp.eq.s32.totalorder %s17, 0
      %p105 = por %p103, %p104
      %p106 = scmp.ne.s32.totalorder %s95, %s98
      %p107 = scmp.eq.s32.totalorder %s22, 1
      %p108 = por %p106, %p107
      %p109 = scmp.ne.s32.totalorder %s98, %s99
      %p110 = scmp.eq.s32.totalorder %s22, 0
      %p111 = por %p109, %p110
      %p112 = scmp.ne.s32.totalorder %s98, %s99
      %p113 = scmp.eq.s32.totalorder %s23, 1
      %p114 = por %p112, %p113
      %p116 = scmp.ne.s32.totalorder %s99, %s115
      %p117 = scmp.eq.s32.totalorder %s23, 0
      %p118 = por %p116, %p117
      %p119 = scmp.le.s32.totalorder 1, %s17
      %p120 = scmp.lt.s32.totalorder %s17, 3
      %p121 = pnand %p119, %p120
      %p122 = pneg %p121
      // Predicated region
      $region9: #{tpu_custom_call.1} parent=5 // pred_check
        _
      $region10: #{tpu_custom_call.1} parent=5 // pred_check_branch
        %124 = sbr.rel (%p121) target = $region12
      $region11: #{tpu_custom_call.1} parent=5 // pred_region
        %s125 = ssub.s32 %s17, 1
      $region12: #{tpu_custom_call.1} parent=5 // pred_fallthru
        _
      %p126 = scmp.lt.s32.totalorder %s17, 2
      // Predicated region
      $region13: #{tpu_custom_call.1} parent=5 // pred_check
        %p127 = pneg %p126
      $region14: #{tpu_custom_call.1} parent=5 // pred_check_branch
        %129 = sbr.rel (%p127) target = $region16
      $region15: #{tpu_custom_call.1} parent=5 // pred_region
        // Predicated region
        $region17: #{tpu_custom_call.1} parent=15 // pred_check
          %p130 = pneg %p51
        $region18: #{tpu_custom_call.1} parent=15 // pred_check_branch
          %132 = sbr.rel (%p130) target = $region20
        $region19: #{tpu_custom_call.1} parent=15 // pred_region
          %s133 = sand.u32 %s41, 1
          %s134 = scalar_lea.sflag [#allocation4], %s133
          %s135 = sand.u32 %s41, 1
          %s136 = smul.addr %s135, 8
          %s137 = scalar_lea.vmem [#allocation3], %s136
          %s138 = sadd.s32 %s24, %s25
          %140 = vsyncadd %s134, 0
          %s141 = smul.addr %s138, 8
          %s142 = scalar_lea.hbm %s0, %s141
          %s144 = sshll.u32 %s142, 4
          %s145 = int_to_ptr.hbm [resolvable:$true] %s144
          %s146 = sshll.u32 %s137, 4
          %s147 = int_to_ptr.vmem [resolvable:$true] %s146
          %149 = dma.hbm_to_vmem [thread:$0]  %s145, 128, %s147, %s134
        $region20: #{tpu_custom_call.1} parent=15 // pred_fallthru
          _
        // Predicated region
        $region21: #{tpu_custom_call.1} parent=15 // pred_check
          %p150 = pneg %p79
        $region22: #{tpu_custom_call.1} parent=15 // pred_check_branch
          %152 = sbr.rel (%p150) target = $region24
        $region23: #{tpu_custom_call.1} parent=15 // pred_region
          %s153 = sand.u32 %s69, 1
          %s154 = scalar_lea.sflag [#allocation7], %s153
          %s155 = sand.u32 %s69, 1
          %s156 = smul.addr %s155, 8
          %s157 = scalar_lea.vmem [#allocation6], %s156
          %s158 = sadd.s32 %s24, %s25
          %160 = vsyncadd %s154, 0
          %s161 = smul.addr %s158, 8
          %s162 = scalar_lea.hbm %s1, %s161
          %s164 = sshll.u32 %s162, 4
          %s165 = int_to_ptr.hbm [resolvable:$true] %s164
          %s166 = sshll.u32 %s157, 4
          %s167 = int_to_ptr.vmem [resolvable:$true] %s166
          %169 = dma.hbm_to_vmem [thread:$0]  %s165, 128, %s167, %s154
        $region24: #{tpu_custom_call.1} parent=15 // pred_fallthru
          _
      $region16: #{tpu_custom_call.1} parent=5 // pred_fallthru
        _
      %p170 = scmp.le.s32.totalorder 1, %s17
      %p171 = scmp.lt.s32.totalorder %s17, 3
      %p172 = pnand %p170, %p171
      %p173 = pneg %p172
      // Predicated region
      $region25: #{tpu_custom_call.1} parent=5 // pred_check
        _
      $region26: #{tpu_custom_call.1} parent=5 // pred_check_branch
        %175 = sbr.rel (%p172) target = $region28
      $region27: #{tpu_custom_call.1} parent=5 // pred_region
        %s176 = ssub.s32 %s17, 1
        %s177 = sand.u32 %s44, 1
        %s178 = scalar_lea.sflag [#allocation4], %s177
        %s179 = sand.u32 %s44, 1
        %s180 = smul.addr %s179, 8
        %s181 = scalar_lea.vmem [#allocation3], %s180
        // Predicated region
        $region29: #{tpu_custom_call.1} parent=27 // pred_check
          %p182 = pneg %p57
        $region30: #{tpu_custom_call.1} parent=27 // pred_check_branch
          %184 = sbr.rel (%p182) target = $region32
        $region31: #{tpu_custom_call.1} parent=27 // pred_region
          %186 = dma.done %s178, 128
        $region32: #{tpu_custom_call.1} parent=27 // pred_fallthru
          _
        %s187 = sand.u32 %s72, 1
        %s188 = scalar_lea.sflag [#allocation7], %s187
        %s189 = sand.u32 %s72, 1
        %s190 = smul.addr %s189, 8
        %s191 = scalar_lea.vmem [#allocation6], %s190
        // Predicated region
        $region33: #{tpu_custom_call.1} parent=27 // pred_check
          %p192 = pneg %p85
        $region34: #{tpu_custom_call.1} parent=27 // pred_check_branch
          %194 = sbr.rel (%p192) target = $region36
        $region35: #{tpu_custom_call.1} parent=27 // pred_region
          %196 = dma.done %s188, 128
        $region36: #{tpu_custom_call.1} parent=27 // pred_fallthru
          _
        %s197 = sand.u32 %s44, 1
        %s198 = scalar_lea.sflag [#allocation4], %s197
        %s199 = sand.u32 %s44, 1
        %s200 = smul.addr %s199, 8
        %s201 = scalar_lea.vmem [#allocation3], %s200
        %p202 = pneg %p57
        %p203 = pneg %p54
        %s204 = sand.u32 %s72, 1
        %s205 = scalar_lea.sflag [#allocation7], %s204
        %s206 = sand.u32 %s72, 1
        %s207 = smul.addr %s206, 8
        %s208 = scalar_lea.vmem [#allocation6], %s207
        %p209 = pneg %p85
        %p210 = pneg %p82
        %p211 = pneg %p111
        %p212 = pneg %p108
        %s213 = sand.u32 %s98, 1
        %s214 = scalar_lea.sflag [#allocation5], %s213
        %s215 = sand.u32 %s98, 1
        %s216 = smul.addr %s215, 24
        %s217 = scalar_lea.vmem [#allocation8], %s216
        %s218 = sadd.s32 %s26, %s27
        %s219 = sadd.s32 %s26, %s27
        %p220 = scmp.eq.s32.totalorder %s27, 0
        // Predicated region
        $region37: #{tpu_custom_call.1} parent=27 // pred_check
          %p221 = pneg %p220
        $region38: #{tpu_custom_call.1} parent=27 // pred_check_branch
          %223 = sbr.rel (%p221) target = $region40
        $region39: #{tpu_custom_call.1} parent=27 // pred_region
          %224 = vst [vmem:[#allocation2] sm:$0xff] 0.0
          %225 = vst [vmem:[#allocation2 + $0x8] sm:$0xff] 0.0
          %226 = vst [vmem:[#allocation2 + $0x10] sm:$0xff] 0.0
        $region40: #{tpu_custom_call.1} parent=27 // pred_fallthru
          _
        %v227 = vld [vmem:[%s181] sm:$0xff]
        %v228 = vld [vmem:[%s191] sm:$0xff]
        %v229 = vmul.f32 %v227, 0.5
        %v230 = vtanh.pop %v229
        %v231 = vmul.f32 %v228, %v230
        %v232 = vld [vmem:[#allocation2] sm:$0xff]
        %v233 = vadd.f32 %v231, 0.0
        %v234 = vadd.f32 %v232, %v233
        %235 = vst [vmem:[#allocation2] sm:$0xff] %v234
        %s236 = scalar_lea.vmem [#allocation2], 8
        %v237 = vld [vmem:[%s236] sm:$0xff]
        %v238 = vadd.f32 %v228, 0.0
        %v239 = vadd.f32 %v237, %v238
        %240 = vst [vmem:[%s236] sm:$0xff] %v239
        %s241 = scalar_lea.vmem [#allocation2], 16
        %v242 = vld [vmem:[%s241] sm:$0xff]
        %v243 = vadd.f32 %v230, 0.0
        %v244 = vadd.f32 %v242, %v243
        %245 = vst [vmem:[%s241] sm:$0xff] %v244
        // Predicated region
        $region41: #{tpu_custom_call.1} parent=27 // pred_check
          %p246 = pneg %p220
        $region42: #{tpu_custom_call.1} parent=27 // pred_check_branch
          %248 = sbr.rel (%p246) target = $region44
        $region43: #{tpu_custom_call.1} parent=27 // pred_region
          %v249 = vld [vmem:[#allocation2] sm:$0xff]
          %v250 = vld [vmem:[#allocation2 + $0x8] sm:$0xff]
          %v251 = vld [vmem:[#allocation2 + $0x10] sm:$0xff]
          %252 = vst [vmem:[%s217] sm:$0xff] %v249
          %253 = vst [vmem:[%s217 + $0x8] sm:$0xff] %v250
          %254 = vst [vmem:[%s217 + $0x10] sm:$0xff] %v251
        $region44: #{tpu_custom_call.1} parent=27 // pred_fallthru
          _
        %s255 = sand.u32 %s98, 1
        %s256 = scalar_lea.sflag [#allocation5], %s255
        %s257 = sand.u32 %s98, 1
        %s258 = smul.addr %s257, 24
        %s259 = scalar_lea.vmem [#allocation8], %s258
        // Predicated region
        $region45: #{tpu_custom_call.1} parent=27 // pred_check
          %p260 = pneg %p108
        $region46: #{tpu_custom_call.1} parent=27 // pred_check_branch
          %262 = sbr.rel (%p260) target = $region48
        $region47: #{tpu_custom_call.1} parent=27 // pred_region
          %264 = vsyncadd %s256, 0
          %s265 = smul.addr %s26, 3
          %s266 = smul.addr %s265, 8
          %s267 = scalar_lea.hbm %s2, %s266
          %s268 = sshll.u32 %s259, 4
          %s269 = int_to_ptr.vmem [resolvable:$true] %s268
          %s270 = sshll.u32 %s267, 4
          %s271 = int_to_ptr.hbm [resolvable:$true] %s270
          %276 = dma.vmem_to_hbm [thread:$0]  %s269, 384, %s271, %s256, 128, 128, 8
        $region48: #{tpu_custom_call.1} parent=27 // pred_fallthru
          _
      $region28: #{tpu_custom_call.1} parent=5 // pred_fallthru
        _
      %p277 = scmp.le.s32.totalorder 2, %s17
      // Predicated region
      $region49: #{tpu_custom_call.1} parent=5 // pred_check
        %p278 = pneg %p277
      $region50: #{tpu_custom_call.1} parent=5 // pred_check_branch
        %280 = sbr.rel (%p278) target = $region52
      $region51: #{tpu_custom_call.1} parent=5 // pred_region
        %s281 = ssub.s32 %s17, 2
        // Predicated region
        $region53: #{tpu_custom_call.1} parent=51 // pred_check
          %p282 = pneg %p114
        $region54: #{tpu_custom_call.1} parent=51 // pred_check_branch
          %284 = sbr.rel (%p282) target = $region56
        $region55: #{tpu_custom_call.1} parent=51 // pred_region
          %s285 = sand.u32 %s99, 1
          %s286 = scalar_lea.sflag [#allocation5], %s285
          %s287 = sand.u32 %s99, 1
          %s288 = smul.addr %s287, 24
          %s289 = scalar_lea.vmem [#allocation8], %s288
          %291 = dma.done %s286, 384
        $region56: #{tpu_custom_call.1} parent=51 // pred_fallthru
          _
      $region52: #{tpu_custom_call.1} parent=5 // pred_fallthru
        _
    $region6: #{tpu_custom_call.1} parent=1 // loop_footer
      %s21 = sadd.s32 1, %s17
    $region7: #{tpu_custom_call.1} parent=1 // loop_footer_branch
      %16 = sbr.rel target = $region3
    $region8: #{tpu_custom_call.1} parent=1 // loop_exit
      _
    %292 = vsyncpa [#allocation4], 1
    %s293 = scalar_lea.sflag [#allocation4], 1
    %294 = vsyncpa %s293, 1
    %295 = vsyncpa [#allocation7], 1
    %s296 = scalar_lea.sflag [#allocation7], 1
    %297 = vsyncpa %s296, 1
    %298 = vsyncpa [#allocation5], 1
    %s299 = scalar_lea.sflag [#allocation5], 1
    %300 = vsyncpa %s299, 1

</llo_original>
